<compile_context>
chip_gen: v7x
topology: tpu7x:2x2x1
jax: 0.10.0
libtpu: 0.0.40
codegen_flags: <defaults>
</compile_context>

<pallas_src>
import jax
import jax.numpy as jnp
from jax import lax
from jax.experimental import pallas as pl
from jax.experimental.pallas import tpu as pltpu


def self_attention_kernel(x_ref, mcol_ref, mrow_ref, wqkv_ref, wo_ref,
                          y_ref, att_ref):
    # x_ref:    (bs*n, m)   bf16
    # mcol_ref: (bs, n, 1)  f32
    # mrow_ref: (bs, 1, n)  f32
    # wqkv_ref: (m, 3d)     bf16   columns = [Wq^T | Wk^T | Wv^T]
    # wo_ref:   (d, m)      bf16
    # y_ref:    (bs*n, m)   f32
    # att_ref:  (bs, n, n)  f32
    bs = mcol_ref.shape[0]
    n = mcol_ref.shape[1]
    d = wo_ref.shape[0]

    # Fused QKV projection over all bs*n rows: one MXU pass, 3d output columns.
    qkv = jnp.dot(x_ref[...], wqkv_ref[...],
                  preferred_element_type=jnp.float32)          # (bs*n, 3d) f32

    neg_inf = jnp.float32(-1000000000.0)
    y_rows = []
    for b in range(bs):  # tiny static batch, unrolled at trace time
        blk = qkv[b * n:(b + 1) * n]                           # (n, 3d)
        q = blk[:, 0:d] * jnp.float32(0.06)                    # f32 VPU scale
        k = blk[:, d:2 * d]
        v = blk[:, 2 * d:3 * d]

        # logits = Q @ K^T without materializing K^T (contract last dims).
        logits = lax.dot_general(
            q.astype(jnp.bfloat16), k.astype(jnp.bfloat16),
            dimension_numbers=(((1,), (1,)), ((), ())),
            preferred_element_type=jnp.float32)                # (n, n)

        # attention_mask = outer(mask, mask) != 0, as a VPU broadcast compare.
        valid = (mcol_ref[b] != 0.0) & (mrow_ref[b] != 0.0)    # (n,1)&(1,n)->(n,n)
        logits = jnp.where(valid, logits, neg_inf)

        # softmax over the last dim (f32; divide on the EUP).
        mx = jnp.max(logits, axis=-1, keepdims=True)
        e = jnp.exp(logits - mx)
        inv = pl.reciprocal(jnp.sum(e, axis=-1, keepdims=True), approx=True)
        att = e * inv                                          # (n, n)

        # TODO(synk): nn.Dropout(0.5) omitted (eval-mode identity).

        # y = matmul(V^T, att)^T == att^T @ V, contracting axis 0 with axis 0
        # (no transpose materialized).
        yb = lax.dot_general(
            att.astype(jnp.bfloat16), v.astype(jnp.bfloat16),
            dimension_numbers=(((0,), (0,)), ((), ())),
            preferred_element_type=jnp.float32)                # (n, d)

        att_ref[b] = att.astype(att_ref.dtype)
        y_rows.append(yb)

    # Batched output projection across the whole (bs*n) slab.
    y_all = jnp.concatenate(y_rows, axis=0)                    # (bs*n, d)
    out = jnp.dot(y_all.astype(jnp.bfloat16), wo_ref[...],
                  preferred_element_type=jnp.float32)          # (bs*n, m)
    y_ref[...] = out.astype(y_ref.dtype)


def self_attention(x, mask, wk, wq, wv, wo):
    """x: (bs, n, m), mask: (bs, n) 0/1.
    wk, wq, wv: (d, m); wo: (m, d) — PyTorch Linear weight layout."""
    bs, n, m = x.shape
    d = wk.shape[0]

    # Fused, pre-transposed QKV weight (m, 3d); bf16 MXU operands.
    w_qkv = jnp.concatenate(
        [wq.T, wk.T, wv.T], axis=1).astype(jnp.bfloat16)       # (m, 3d)
    w_o = wo.T.astype(jnp.bfloat16)                            # (d, m)

    x2d = x.reshape(bs * n, m).astype(jnp.bfloat16)
    mask_col = mask.astype(jnp.float32).reshape(bs, n, 1)
    mask_row = mask.astype(jnp.float32).reshape(bs, 1, n)

    vmem = pltpu.MemorySpace.VMEM
    y2d, att = pl.pallas_call(
        self_attention_kernel,
        out_shape=(
            jax.ShapeDtypeStruct((bs * n, m), jnp.float32),
            jax.ShapeDtypeStruct((bs, n, n), jnp.float32),
        ),
        in_specs=[pl.BlockSpec(memory_space=vmem)] * 5,
        out_specs=(pl.BlockSpec(memory_space=vmem),
                   pl.BlockSpec(memory_space=vmem)),
    )(x2d, mask_col, mask_row, w_qkv, w_o)

    return y2d.reshape(bs, n, m), att


def reference_forward(x, mask, wk, wq, wv, wo):
    K = x @ wk.T
    Q = (x @ wq.T) * 0.06
    V = x @ wv.T
    logits = jnp.einsum('bid,bjd->bij', Q, K)
    am = jnp.einsum('bi,bj->bij', mask, mask) != 0.0
    logits = jnp.where(am, logits, -1000000000.0)
    att = jax.nn.softmax(logits, axis=-1)
    y = jnp.einsum('bji,bjd->bid', att, V)   # matmul(V^T, att)^T
    y = y @ wo.T
    return y, att


if __name__ == "__main__":
    bs, n, m, d = 2, 8, 32, 32   # batch, seq, input_size, output_size

    key = jax.random.PRNGKey(0)
    kx, kk, kq, kv, ko = jax.random.split(key, 5)

    x = jax.random.normal(kx, (bs, n, m), dtype=jnp.float32)
    # 0/1 mask with some padded positions in the second batch element
    mask = jnp.ones((bs, n), dtype=jnp.float32)
    mask = mask.at[1, 6:].set(0.0)

    scale = 1.0 / jnp.sqrt(jnp.float32(m))
    wk = jax.random.uniform(kk, (d, m), jnp.float32, -scale, scale)
    wq = jax.random.uniform(kq, (d, m), jnp.float32, -scale, scale)
    wv = jax.random.uniform(kv, (d, m), jnp.float32, -scale, scale)
    wo = jax.random.uniform(ko, (m, d), jnp.float32, -scale, scale)

    y, att = self_attention(x, mask, wk, wq, wv, wo)
    y = jax.block_until_ready(y)
    att = jax.block_until_ready(att)

    y_ref, att_ref = reference_forward(x, mask, wk, wq, wv, wo)

    assert y.shape == (bs, n, m) and att.shape == (bs, n, n)
    # Tolerances loosened for bf16 MXU operands + EUP approx reciprocal.
    assert jnp.allclose(y, y_ref, atol=3e-2, rtol=3e-2), "y mismatch"
    assert jnp.allclose(att, att_ref, atol=1e-2, rtol=1e-2), "att mismatch"

    print("KERNEL_OK")
</pallas_src>

<mosaic_0001>
module attributes {stable_mosaic.version = 11 : i64} {
  func.func @self_attention_kernel(%arg0: memref<16x32xbf16, #tpu.memory_space<vmem>>, %arg1: memref<2x8x1xf32, #tpu.memory_space<vmem>>, %arg2: memref<2x1x8xf32, #tpu.memory_space<vmem>>, %arg3: memref<32x96xbf16, #tpu.memory_space<vmem>>, %arg4: memref<32x32xbf16, #tpu.memory_space<vmem>>, %arg5: memref<16x32xf32, #tpu.memory_space<vmem>>, %arg6: memref<2x8x8xf32, #tpu.memory_space<vmem>>) attributes {dimension_semantics = [], scalar_prefetch = 0 : i64, scratch_operands = 0 : i64, tpu.core_type = #tpu.core_type<tc>} {
    %c0 = arith.constant 0 : index
    %c0_0 = arith.constant 0 : index
    %0 = vector.load %arg0[%c0, %c0_0] : memref<16x32xbf16, #tpu.memory_space<vmem>>, vector<16x32xbf16>
    %c0_1 = arith.constant 0 : index
    %c0_2 = arith.constant 0 : index
    %1 = vector.load %arg3[%c0_1, %c0_2] : memref<32x96xbf16, #tpu.memory_space<vmem>>, vector<32x96xbf16>
    %cst = arith.constant dense<0.000000e+00> : vector<16x96xf32>
    %2 = tpu.matmul %0, %1, %cst {dimension_numbers = #tpu.dot_dimension_numbers<[1], [0], [0], [1], [0, 0, 1, 1], [], []>} : vector<16x32xbf16>, vector<32x96xbf16>, vector<16x96xf32> -> vector<16x96xf32>
    %3 = vector.extract_strided_slice %2 {offsets = [0, 0], sizes = [8, 96], strides = [1, 1]} : vector<16x96xf32> to vector<8x96xf32>
    %4 = vector.extract_strided_slice %3 {offsets = [0, 0], sizes = [8, 32], strides = [1, 1]} : vector<8x96xf32> to vector<8x32xf32>
    %cst_3 = arith.constant 6.000000e-02 : f32
    %5 = vector.broadcast %cst_3 : f32 to vector<8x32xf32>
    %6 = arith.mulf %4, %5 : vector<8x32xf32>
    %7 = vector.extract_strided_slice %3 {offsets = [0, 32], sizes = [8, 32], strides = [1, 1]} : vector<8x96xf32> to vector<8x32xf32>
    %8 = vector.extract_strided_slice %3 {offsets = [0, 64], sizes = [8, 32], strides = [1, 1]} : vector<8x96xf32> to vector<8x32xf32>
    %9 = arith.truncf %6 : vector<8x32xf32> to vector<8x32xbf16>
    %10 = arith.truncf %7 : vector<8x32xf32> to vector<8x32xbf16>
    %cst_4 = arith.constant dense<0.000000e+00> : vector<8x8xf32>
    %11 = tpu.matmul %9, %10, %cst_4 {dimension_numbers = #tpu.dot_dimension_numbers<[1], [1], [0], [0], [0, 0, 1, 0], [], []>} : vector<8x32xbf16>, vector<8x32xbf16>, vector<8x8xf32> -> vector<8x8xf32>
    %c0_5 = arith.constant 0 : index
    %c0_6 = arith.constant 0 : index
    %c0_7 = arith.constant 0 : index
    %12 = vector.load %arg1[%c0_5, %c0_6, %c0_7] : memref<2x8x1xf32, #tpu.memory_space<vmem>>, vector<1x8x1xf32>
    %13 = vector.shape_cast %12 : vector<1x8x1xf32> to vector<8x1xf32>
    %cst_8 = arith.constant 0.000000e+00 : f32
    %14 = vector.broadcast %cst_8 : f32 to vector<8x1xf32>
    %15 = arith.cmpf one, %13, %14 : vector<8x1xf32>
    %c0_9 = arith.constant 0 : index
    %c0_10 = arith.constant 0 : index
    %c0_11 = arith.constant 0 : index
    %16 = vector.load %arg2[%c0_9, %c0_10, %c0_11] : memref<2x1x8xf32, #tpu.memory_space<vmem>>, vector<1x1x8xf32>
    %17 = vector.shape_cast %16 : vector<1x1x8xf32> to vector<1x8xf32>
    %cst_12 = arith.constant 0.000000e+00 : f32
    %18 = vector.broadcast %cst_12 : f32 to vector<1x8xf32>
    %19 = arith.cmpf one, %17, %18 : vector<1x8xf32>
    %20 = vector.broadcast %15 : vector<8x1xi1> to vector<8x8xi1>
    %21 = vector.broadcast %19 : vector<1x8xi1> to vector<8x8xi1>
    %22 = arith.andi %20, %21 : vector<8x8xi1>
    %cst_13 = arith.constant -1.000000e+09 : f32
    %23 = vector.broadcast %cst_13 : f32 to vector<8x8xf32>
    %24 = arith.select %22, %11, %23 : vector<8x8xi1>, vector<8x8xf32>
    %cst_14 = arith.constant dense<0xFF800000> : vector<8xf32>
    %25 = vector.multi_reduction <maximumf>, %24, %cst_14 [1] : vector<8x8xf32> to vector<8xf32>
    %26 = vector.shape_cast %25 : vector<8xf32> to vector<8x1xf32>
    %27 = vector.broadcast %26 : vector<8x1xf32> to vector<8x8xf32>
    %28 = arith.subf %24, %27 : vector<8x8xf32>
    %29 = math.exp %28 : vector<8x8xf32>
    %cst_15 = arith.constant dense<0.000000e+00> : vector<8xf32>
    %30 = vector.multi_reduction <add>, %29, %cst_15 [1] : vector<8x8xf32> to vector<8xf32>
    %31 = vector.shape_cast %30 : vector<8xf32> to vector<8x1xf32>
    %32 = tpu.reciprocal %31 {approx = true} : vector<8x1xf32> -> vector<8x1xf32>
    %33 = vector.broadcast %32 : vector<8x1xf32> to vector<8x8xf32>
    %34 = arith.mulf %29, %33 : vector<8x8xf32>
    %35 = arith.truncf %34 : vector<8x8xf32> to vector<8x8xbf16>
    %36 = arith.truncf %8 : vector<8x32xf32> to vector<8x32xbf16>
    %cst_16 = arith.constant dense<0.000000e+00> : vector<8x32xf32>
    %37 = tpu.matmul %35, %36, %cst_16 {dimension_numbers = #tpu.dot_dimension_numbers<[0], [0], [1], [1], [0, 1, 1, 1], [], []>} : vector<8x8xbf16>, vector<8x32xbf16>, vector<8x32xf32> -> vector<8x32xf32>
    %c0_17 = arith.constant 0 : index
    %c0_18 = arith.constant 0 : index
    %c0_19 = arith.constant 0 : index
    %38 = vector.load %arg6[%c0_17, %c0_18, %c0_19] : memref<2x8x8xf32, #tpu.memory_space<vmem>>, vector<1x8x8xf32>
    %39 = vector.shape_cast %38 : vector<1x8x8xf32> to vector<8x8xf32>
    %40 = vector.shape_cast %34 : vector<8x8xf32> to vector<1x8x8xf32>
    tpu.vector_store %arg6[%c0_17, %c0_18, %c0_19], %40 {strides = array<i32>} : memref<2x8x8xf32, #tpu.memory_space<vmem>>, vector<1x8x8xf32>,
    %41 = vector.extract_strided_slice %2 {offsets = [8, 0], sizes = [8, 96], strides = [1, 1]} : vector<16x96xf32> to vector<8x96xf32>
    %42 = vector.extract_strided_slice %41 {offsets = [0, 0], sizes = [8, 32], strides = [1, 1]} : vector<8x96xf32> to vector<8x32xf32>
    %cst_20 = arith.constant 6.000000e-02 : f32
    %43 = vector.broadcast %cst_20 : f32 to vector<8x32xf32>
    %44 = arith.mulf %42, %43 : vector<8x32xf32>
    %45 = vector.extract_strided_slice %41 {offsets = [0, 32], sizes = [8, 32], strides = [1, 1]} : vector<8x96xf32> to vector<8x32xf32>
    %46 = vector.extract_strided_slice %41 {offsets = [0, 64], sizes = [8, 32], strides = [1, 1]} : vector<8x96xf32> to vector<8x32xf32>
    %47 = arith.truncf %44 : vector<8x32xf32> to vector<8x32xbf16>
    %48 = arith.truncf %45 : vector<8x32xf32> to vector<8x32xbf16>
    %cst_21 = arith.constant dense<0.000000e+00> : vector<8x8xf32>
    %49 = tpu.matmul %47, %48, %cst_21 {dimension_numbers = #tpu.dot_dimension_numbers<[1], [1], [0], [0], [0, 0, 1, 0], [], []>} : vector<8x32xbf16>, vector<8x32xbf16>, vector<8x8xf32> -> vector<8x8xf32>
    %c1 = arith.constant 1 : index
    %c0_22 = arith.constant 0 : index
    %c0_23 = arith.constant 0 : index
    %50 = vector.load %arg1[%c1, %c0_22, %c0_23] : memref<2x8x1xf32, #tpu.memory_space<vmem>>, vector<1x8x1xf32>
    %51 = vector.shape_cast %50 : vector<1x8x1xf32> to vector<8x1xf32>
    %cst_24 = arith.constant 0.000000e+00 : f32
    %52 = vector.broadcast %cst_24 : f32 to vector<8x1xf32>
    %53 = arith.cmpf one, %51, %52 : vector<8x1xf32>
    %c1_25 = arith.constant 1 : index
    %c0_26 = arith.constant 0 : index
    %c0_27 = arith.constant 0 : index
    %54 = vector.load %arg2[%c1_25, %c0_26, %c0_27] : memref<2x1x8xf32, #tpu.memory_space<vmem>>, vector<1x1x8xf32>
    %55 = vector.shape_cast %54 : vector<1x1x8xf32> to vector<1x8xf32>
    %cst_28 = arith.constant 0.000000e+00 : f32
    %56 = vector.broadcast %cst_28 : f32 to vector<1x8xf32>
    %57 = arith.cmpf one, %55, %56 : vector<1x8xf32>
    %58 = vector.broadcast %53 : vector<8x1xi1> to vector<8x8xi1>
    %59 = vector.broadcast %57 : vector<1x8xi1> to vector<8x8xi1>
    %60 = arith.andi %58, %59 : vector<8x8xi1>
    %cst_29 = arith.constant -1.000000e+09 : f32
    %61 = vector.broadcast %cst_29 : f32 to vector<8x8xf32>
    %62 = arith.select %60, %49, %61 : vector<8x8xi1>, vector<8x8xf32>
    %cst_30 = arith.constant dense<0xFF800000> : vector<8xf32>
    %63 = vector.multi_reduction <maximumf>, %62, %cst_30 [1] : vector<8x8xf32> to vector<8xf32>
    %64 = vector.shape_cast %63 : vector<8xf32> to vector<8x1xf32>
    %65 = vector.broadcast %64 : vector<8x1xf32> to vector<8x8xf32>
    %66 = arith.subf %62, %65 : vector<8x8xf32>
    %67 = math.exp %66 : vector<8x8xf32>
    %cst_31 = arith.constant dense<0.000000e+00> : vector<8xf32>
    %68 = vector.multi_reduction <add>, %67, %cst_31 [1] : vector<8x8xf32> to vector<8xf32>
    %69 = vector.shape_cast %68 : vector<8xf32> to vector<8x1xf32>
    %70 = tpu.reciprocal %69 {approx = true} : vector<8x1xf32> -> vector<8x1xf32>
    %71 = vector.broadcast %70 : vector<8x1xf32> to vector<8x8xf32>
    %72 = arith.mulf %67, %71 : vector<8x8xf32>
    %73 = arith.truncf %72 : vector<8x8xf32> to vector<8x8xbf16>
    %74 = arith.truncf %46 : vector<8x32xf32> to vector<8x32xbf16>
    %cst_32 = arith.constant dense<0.000000e+00> : vector<8x32xf32>
    %75 = tpu.matmul %73, %74, %cst_32 {dimension_numbers = #tpu.dot_dimension_numbers<[0], [0], [1], [1], [0, 1, 1, 1], [], []>} : vector<8x8xbf16>, vector<8x32xbf16>, vector<8x32xf32> -> vector<8x32xf32>
    %c1_33 = arith.constant 1 : index
    %c0_34 = arith.constant 0 : index
    %c0_35 = arith.constant 0 : index
    %76 = vector.load %arg6[%c1_33, %c0_34, %c0_35] : memref<2x8x8xf32, #tpu.memory_space<vmem>>, vector<1x8x8xf32>
    %77 = vector.shape_cast %76 : vector<1x8x8xf32> to vector<8x8xf32>
    %78 = vector.shape_cast %72 : vector<8x8xf32> to vector<1x8x8xf32>
    tpu.vector_store %arg6[%c1_33, %c0_34, %c0_35], %78 {strides = array<i32>} : memref<2x8x8xf32, #tpu.memory_space<vmem>>, vector<1x8x8xf32>,
    %79 = tpu.concatenate %37, %75 in 0 : vector<8x32xf32>, vector<8x32xf32> -> vector<16x32xf32>
    %80 = arith.truncf %79 : vector<16x32xf32> to vector<16x32xbf16>
    %c0_36 = arith.constant 0 : index
    %c0_37 = arith.constant 0 : index
    %81 = vector.load %arg4[%c0_36, %c0_37] : memref<32x32xbf16, #tpu.memory_space<vmem>>, vector<32x32xbf16>
    %cst_38 = arith.constant dense<0.000000e+00> : vector<16x32xf32>
    %82 = tpu.matmul %80, %81, %cst_38 {dimension_numbers = #tpu.dot_dimension_numbers<[1], [0], [0], [1], [0, 0, 1, 1], [], []>} : vector<16x32xbf16>, vector<32x32xbf16>, vector<16x32xf32> -> vector<16x32xf32>
    %c0_39 = arith.constant 0 : index
    %c0_40 = arith.constant 0 : index
    %83 = vector.load %arg5[%c0_39, %c0_40] : memref<16x32xf32, #tpu.memory_space<vmem>>, vector<16x32xf32>
    tpu.vector_store %arg5[%c0_39, %c0_40], %82 {strides = array<i32>} : memref<16x32xf32, #tpu.memory_space<vmem>>, vector<16x32xf32>,
    return
  }
}

</mosaic_0001>

<llo_original>
// kernel: tpu_custom_call.1
$region0: #{tpu_custom_call.1}
  #allocation0 [shape = 'u32[]', space=smem, size = 0x4, offset = 0x4, fixed_abs, tag = 'smem constant byte address 0x4 - core index']
  #allocation1 [shape = 'u32[144,128]{1,0:T(1,128)}', space=vmem, size = 0x12000, scoped, tag = 'internal scratch']
  %s0 = inlined_call_operand.hbm [shape: bf16[16,32], index: 0, kind: input, shape index: {}]
  %s1 = inlined_call_operand.vmem [shape: f32[2,8,1], index: 1, kind: input, shape index: {}]
  %s2 = inlined_call_operand.hbm [shape: f32[2,1,8], index: 2, kind: input, shape index: {}]
  %s3 = inlined_call_operand.vmem [shape: bf16[32,96], index: 3, kind: input, shape index: {}]
  %s4 = inlined_call_operand.vmem [shape: bf16[32,32], index: 4, kind: input, shape index: {}]
  %s5 = inlined_call_operand.hbm [shape: f32[16,32], index: 5, kind: output, shape index: {0}]
  %s6 = inlined_call_operand.hbm [shape: f32[2,8,8], index: 6, kind: output, shape index: {1}]
  %7 = xla_tuple %s5, %s6
  %s8 = sld [smem:[#allocation0]]
  $region46: #{tpu_custom_call.1} parent=0
    _
  %s10 = ssub.s32 1, %s8
  %s11 = scalar_select 0, %s10, %s8
  $region1: #{tpu_custom_call.1} parent=0
    #allocation2 [shape = 'u8[4096]{0}', space=vmem, size = 0x1000, scoped, tag = 'input window, operand 0, single buffered']
    #allocation3 [shape = 's32[1]{0}', space=sflag, size = 0x4, scoped, tag = 'scoped memory for tpu_custom_call.1']
    #allocation4 [shape = 's32[1]{0}', space=sflag, size = 0x4, scoped, tag = 'scoped memory for tpu_custom_call.1']
    #allocation5 [shape = 'u8[1024]{0}', space=vmem, size = 0x400, scoped, tag = 'input window, operand 2, single buffered']
    #allocation6 [shape = 's32[1]{0}', space=sflag, size = 0x4, scoped, tag = 'scoped memory for tpu_custom_call.1']
    #allocation7 [shape = 'u8[8192]{0}', space=vmem, size = 0x2000, scoped, tag = 'output window, operand 0, single buffered']
    #allocation8 [shape = 'u8[8192]{0}', space=vmem, size = 0x2000, scoped, tag = 'output window, operand 1, single buffered']
    #allocation9 [shape = 's32[1]{0}', space=sflag, size = 0x4, scoped, tag = 'scoped memory for tpu_custom_call.1']
    %12 = vsyncpa [#allocation3], 0
    %13 = vsyncpa [#allocation6], 0
    %14 = vsyncpa [#allocation4], 0
    %15 = vsyncpa [#allocation9], 0
    // Predicated region
    $region2: #{tpu_custom_call.1} parent=1 // pred_check
      _
    $region3: #{tpu_custom_call.1} parent=1 // pred_check_branch
      %17 = sbr.rel (0) target = $region5
    $region4: #{tpu_custom_call.1} parent=1 // pred_region
      %s19 = ssub.s32 128, 128
      %20 = vsyncadd [#allocation3], %s19
      %s21 = sshll.u32 [#allocation2], 4
      %s22 = int_to_ptr.vmem [resolvable:$true] %s21
      %27 = dma.hbm_to_vmem [thread:$0]  %s0, 128, %s22, [#allocation3], 64, 64, 4
    $region5: #{tpu_custom_call.1} parent=1 // pred_fallthru
      _
    // Predicated region
    $region6: #{tpu_custom_call.1} parent=1 // pred_check
      _
    $region7: #{tpu_custom_call.1} parent=1 // pred_check_branch
      %29 = sbr.rel (0) target = $region9
    $region8: #{tpu_custom_call.1} parent=1 // pred_region
      _
    $region9: #{tpu_custom_call.1} parent=1 // pred_fallthru
      _
    // Predicated region
    $region10: #{tpu_custom_call.1} parent=1 // pred_check
      _
    $region11: #{tpu_custom_call.1} parent=1 // pred_check_branch
      %31 = sbr.rel (0) target = $region13
    $region12: #{tpu_custom_call.1} parent=1 // pred_region
      %s33 = ssub.s32 32, 32
      %34 = vsyncadd [#allocation6], %s33
      %s35 = sshll.u32 [#allocation5], 4
      %s36 = int_to_ptr.vmem [resolvable:$true] %s35
      %41 = dma.hbm_to_vmem [thread:$0]  %s2, 32, %s36, [#allocation6], 16, 16, 1
    $region13: #{tpu_custom_call.1} parent=1 // pred_fallthru
      _
    // Predicated region
    $region14: #{tpu_custom_call.1} parent=1 // pred_check
      _
    $region15: #{tpu_custom_call.1} parent=1 // pred_check_branch
      %43 = sbr.rel (0) target = $region17
    $region16: #{tpu_custom_call.1} parent=1 // pred_region
      _
    $region17: #{tpu_custom_call.1} parent=1 // pred_fallthru
      _
    // Predicated region
    $region18: #{tpu_custom_call.1} parent=1 // pred_check
      _
    $region19: #{tpu_custom_call.1} parent=1 // pred_check_branch
      %45 = sbr.rel (0) target = $region21
    $region20: #{tpu_custom_call.1} parent=1 // pred_region
      _
    $region21: #{tpu_custom_call.1} parent=1 // pred_fallthru
      _
    // Predicated region
    $region22: #{tpu_custom_call.1} parent=1 // pred_check
      _
    $region23: #{tpu_custom_call.1} parent=1 // pred_check_branch
      %47 = sbr.rel (0) target = $region25
    $region24: #{tpu_custom_call.1} parent=1 // pred_region
      %48 = dma.done [#allocation3], 128
    $region25: #{tpu_custom_call.1} parent=1 // pred_fallthru
      _
    // Predicated region
    $region26: #{tpu_custom_call.1} parent=1 // pred_check
      _
    $region27: #{tpu_custom_call.1} parent=1 // pred_check_branch
      %50 = sbr.rel (0) target = $region29
    $region28: #{tpu_custom_call.1} parent=1 // pred_region
      %51 = dma.done [#allocation6], 32
    $region29: #{tpu_custom_call.1} parent=1 // pred_fallthru
      _
    %v53 = vld [vmem:[#allocation2] sm:$0xf]
    %v54 = vld [vmem:[#allocation2 + $0x4] sm:$0xf]
    %v55 = vld [vmem:[%s3] sm:$0xf]
    %v56 = vld [vmem:[%s3 + $0x4] sm:$0xf]
    %v57 = vld [vmem:[%s3 + $0x8] sm:$0xf]
    %v58 = vld [vmem:[%s3 + $0xc] sm:$0xf]
    %v61 = vunpack.c.l.b16 %v53
    %v62 = vunpack.c.l.b16 %v54
    %v63 = vpack.c.b16 %v62, %v61
    %v68 = vunpack.c.l.b16 %v55
    %v69 = vunpack.c.l.b16 %v56
    %v70 = vunpack.c.l.b16 %v57
    %v71 = vunpack.c.l.b16 %v58
    %v72 = vpack.c.b16 %v69, %v68
    %v73 = vpack.c.b16 %v71, %v70
    %vm76 = vcmask 261120
    %v78 = vsel %vm76, %v63, 0
    %80 = vmatprep.subr.bf16.mxu0 0
    %81 = vmatpush1.bf16.msra.mxu0 %v72
    %82 = vmatprep.subr.bf16.mxu0 0
    %83 = vmatpush1.bf16.msra.mxu0 %v73
    %84 = vmatprep.subr.bf16.mxu0 0
    %85 = vmatpush1.bf16.msra.mxu0 0
    %86 = vmatprep.subr.bf16.mxu0 0
    %87 = vmatpush1.bf16.msra.mxu0 0
    %88 = vmatprep.subr.bf16.mxu0 0
    %89 = vmatpush1.bf16.msra.mxu0 0
    %90 = vmatprep.subr.bf16.mxu0 0
    %91 = vmatpush1.bf16.msra.mxu0 0
    %92 = vmatprep.subr.bf16.mxu0 0
    %93 = vmatpush1.bf16.msra.mxu0 0
    %94 = vmatprep.subr.bf16.mxu0 0
    %95 = vmatpush1.bf16.msra.mxu0 0
    %96 = vmatprep.subr.bf16.mxu0 0
    %97 = vmatpush1.bf16.msra.mxu0 0
    %98 = vmatprep.subr.bf16.mxu0 0
    %99 = vmatpush1.bf16.msra.mxu0 0
    %100 = vmatprep.subr.bf16.mxu0 0
    %101 = vmatpush1.bf16.msra.mxu0 0
    %102 = vmatprep.subr.bf16.mxu0 0
    %103 = vmatpush1.bf16.msra.mxu0 0
    %104 = vmatprep.subr.bf16.mxu0 0
    %105 = vmatpush1.bf16.msra.mxu0 0
    %106 = vmatprep.subr.bf16.mxu0 0
    %107 = vmatpush1.bf16.msra.mxu0 0
    %108 = vmatprep.subr.bf16.mxu0 0
    %109 = vmatpush1.bf16.msra.mxu0 0
    %110 = vmatprep.subr.bf16.mxu0 0
    %111 = vmatpush1.bf16.msra.mxu0 0
    %112 = vmatprep.mubr.bf16.mxu0 0
    %113 = vmatmul.mubr.bf16.gmra.mrb[0].mxu0 %v78
    %v114 = vpop.f32.mrb[0].mxu0
    %v115 = vadd.f32 0.0, %v114
    %v116 = vpop.f32.mrb[0].mxu0
    %v117 = vpop.f32.mrb[0].mxu0
    %v118 = vadd.f32 0.0, %v117
    %v119 = vpop.f32.mrb[0].mxu0
    %120 = vdwg.mxu0
    %v121 = vmul.f32 %v115, 0.06
    %v122 = vpack.c.bf16 %v121, %v121
    %v123 = vpack.c.bf16 %v115, %v115
    %125 = vrot.lane.b32.xlu0 %v123, 96
    %v126 = vpop.permute.xlu0 %125
    %v128 = vsel %vm76, %v122, 0
    %v131 = vsel %vm76, %v126, 0
    %133 = vmatprep.subr.bf16.mxu0 0
    %134 = vmatpush1.bf16.xpose.msra.mxu0 %v131
    %135 = vmatprep.subr.bf16.mxu0 0
    %136 = vmatpush1.bf16.xpose.msra.mxu0 0
    %137 = vmatprep.subr.bf16.mxu0 0
    %138 = vmatpush1.bf16.xpose.msra.mxu0 0
    %139 = vmatprep.subr.bf16.mxu0 0
    %140 = vmatpush1.bf16.xpose.msra.mxu0 0
    %141 = vmatprep.subr.bf16.mxu0 0
    %142 = vmatpush1.bf16.xpose.msra.mxu0 0
    %143 = vmatprep.subr.bf16.mxu0 0
    %144 = vmatpush1.bf16.xpose.msra.mxu0 0
    %145 = vmatprep.subr.bf16.mxu0 0
    %146 = vmatpush1.bf16.xpose.msra.mxu0 0
    %147 = vmatprep.subr.bf16.mxu0 0
    %148 = vmatpush1.bf16.xpose.msra.mxu0 0
    %149 = vmatprep.subr.bf16.mxu0 0
    %150 = vmatpush1.bf16.xpose.msra.mxu0 0
    %151 = vmatprep.subr.bf16.mxu0 0
    %152 = vmatpush1.bf16.xpose.msra.mxu0 0
    %153 = vmatprep.subr.bf16.mxu0 0
    %154 = vmatpush1.bf16.xpose.msra.mxu0 0
    %155 = vmatprep.subr.bf16.mxu0 0
    %156 = vmatpush1.bf16.xpose.msra.mxu0 0
    %157 = vmatprep.subr.bf16.mxu0 0
    %158 = vmatpush1.bf16.xpose.msra.mxu0 0
    %159 = vmatprep.subr.bf16.mxu0 0
    %160 = vmatpush1.bf16.xpose.msra.mxu0 0
    %161 = vmatprep.subr.bf16.mxu0 0
    %162 = vmatpush1.bf16.xpose.msra.mxu0 0
    %163 = vmatprep.subr.bf16.mxu0 0
    %164 = vmatpush1.bf16.xpose.msra.mxu0 0
    %165 = vmatprep.mubr.bf16.mxu0 0
    %166 = vmatmul.mubr.bf16.gmra.mrb[0].mxu0 %v128
    %v167 = vpop.f32.mrb[0].mxu0
    %v168 = vadd.f32 0.0, %v167
    %v169 = vpop.f32.mrb[0].mxu0
    %v170 = vpop.f32.mrb[0].mxu0
    %v171 = vpop.f32.mrb[0].mxu0
    %172 = vdwg.mxu0
    %v173 = vld [vmem:[%s1] sm:$0xff]
    %vm174 = vcmp.ne.f32.partialorder %v173, 0.0
    %v175 = vld [vmem:[#allocation5] sm:$0x1]
    %vm176 = vcmp.ne.f32.partialorder %v175, 0.0
    %v177 = vsel %vm174, 1, 0
    %178 = vset.pattern.permute.xlu0 0
    %179 = vperm.xlu0 %178, %v177
    %v180 = vpop.permute.xlu0 %179
    %vm181 = vcmp.eq.s32.totalorder %v180, 1
    %v182 = vsel %vm176, 1, 0
    %v183 = vlaneseq
    %v184 = vshrl.u32 %v183, 7
    %v185 = vsub.s32 0, %v184
    %v186 = vrot.slane %v182, %v185
    %vm187 = vcmp.eq.s32.totalorder %v186, 1
    %vm188 = vmand %vm181, %vm187
    %v189 = vsel %vm188, %v168, -1e+09
    %vm190 = vcmask 64512
    %v191 = vsel %vm190, %v189, -inf
    %192 = vmax.xlane.f32.xlu0 %v191
    %v193 = vpop.xlane.xlu0 %192
    %v194 = vsub.f32 %v189, %v193
    %v195 = vmul.f32 %v194, 1.442695
    %v196 = vpow.pop %v195
    %v197 = vsel %vm190, %v196, 0.0
    %198 = vadd.xlane.f32.xlu0 %v197
    %v199 = vpop.xlane.xlu0 %198
    %v200 = vrcp.pop %v199
    %v201 = vmul.f32 %v196, %v200
    %v202 = vpack.c.bf16 %v201, %v201
    %203 = vxpose.xlu0.c.b16.start [1/8] %v202, 128
    %204 = vxpose.xlu0.c.b16.cont [2/8] 0, 128
    %205 = vxpose.xlu0.c.b16.cont [3/8] 0, 128
    %206 = vxpose.xlu0.c.b16.cont [4/8] 0, 128
    %207 = vxpose.xlu0.c.b16.cont [5/8] 0, 128
    %208 = vxpose.xlu0.c.b16.cont [6/8] 0, 128
    %209 = vxpose.xlu0.c.b16.cont [7/8] 0, 128
    %210 = vxpose.xlu0.c.b16.end [8/8] 0, 128
    %v211 = vpop.trf.xlu0
    %v212 = vpop.trf.xlu0
    %v213 = vpop.trf.xlu0
    %v214 = vpop.trf.xlu0
    %v215 = vpop.trf.xlu0
    %v216 = vpop.trf.xlu0
    %v217 = vpop.trf.xlu0
    %v218 = vpop.trf.xlu0
    %219 = vrot.lane.b32.xlu0 %v123, 64
    %v220 = vpop.permute.xlu0 %219
    %v222 = vsel %vm190, %v211, 0
    %vm224 = vcmask 1043456
    %v226 = vsel %vm224, %v220, 0
    %228 = vmatprep.subr.bf16.mxu0 0
    %229 = vmatpush1.bf16.msra.mxu0 %v226
    %230 = vmatprep.subr.bf16.mxu0 0
    %231 = vmatpush1.bf16.msra.mxu0 0
    %232 = vmatprep.subr.bf16.mxu0 0
    %233 = vmatpush1.bf16.msra.mxu0 0
    %234 = vmatprep.subr.bf16.mxu0 0
    %235 = vmatpush1.bf16.msra.mxu0 0
    %236 = vmatprep.subr.bf16.mxu0 0
    %237 = vmatpush1.bf16.msra.mxu0 0
    %238 = vmatprep.subr.bf16.mxu0 0
    %239 = vmatpush1.bf16.msra.mxu0 0
    %240 = vmatprep.subr.bf16.mxu0 0
    %241 = vmatpush1.bf16.msra.mxu0 0
    %242 = vmatprep.subr.bf16.mxu0 0
    %243 = vmatpush1.bf16.msra.mxu0 0
    %244 = vmatprep.subr.bf16.mxu0 0
    %245 = vmatpush1.bf16.msra.mxu0 0
    %246 = vmatprep.subr.bf16.mxu0 0
    %247 = vmatpush1.bf16.msra.mxu0 0
    %248 = vmatprep.subr.bf16.mxu0 0
    %249 = vmatpush1.bf16.msra.mxu0 0
    %250 = vmatprep.subr.bf16.mxu0 0
    %251 = vmatpush1.bf16.msra.mxu0 0
    %252 = vmatprep.subr.bf16.mxu0 0
    %253 = vmatpush1.bf16.msra.mxu0 0
    %254 = vmatprep.subr.bf16.mxu0 0
    %255 = vmatpush1.bf16.msra.mxu0 0
    %256 = vmatprep.subr.bf16.mxu0 0
    %257 = vmatpush1.bf16.msra.mxu0 0
    %258 = vmatprep.subr.bf16.mxu0 0
    %259 = vmatpush1.bf16.msra.mxu0 0
    %260 = vmatprep.mubr.bf16.mxu0 0
    %261 = vmatmul.mubr.bf16.gmra.mrb[0].mxu0 %v222
    %v262 = vpop.f32.mrb[0].mxu0
    %v263 = vadd.f32 0.0, %v262
    %v264 = vpop.f32.mrb[0].mxu0
    %v265 = vpop.f32.mrb[0].mxu0
    %v266 = vpop.f32.mrb[0].mxu0
    %267 = vdwg.mxu0
    %268 = vst.msk [vmem:[#allocation8] sm:$0xff] %vm190, %v201
    %v269 = vmul.f32 %v118, 0.06
    %v270 = vpack.c.bf16 %v269, %v269
    %v271 = vpack.c.bf16 %v118, %v118
    %273 = vrot.lane.b32.xlu0 %v271, 96
    %v274 = vpop.permute.xlu0 %273
    %v276 = vsel %vm76, %v270, 0
    %v279 = vsel %vm76, %v274, 0
    %281 = vmatprep.subr.bf16.mxu0 0
    %282 = vmatpush1.bf16.xpose.msra.mxu0 %v279
    %283 = vmatprep.subr.bf16.mxu0 0
    %284 = vmatpush1.bf16.xpose.msra.mxu0 0
    %285 = vmatprep.subr.bf16.mxu0 0
    %286 = vmatpush1.bf16.xpose.msra.mxu0 0
    %287 = vmatprep.subr.bf16.mxu0 0
    %288 = vmatpush1.bf16.xpose.msra.mxu0 0
    %289 = vmatprep.subr.bf16.mxu0 0
    %290 = vmatpush1.bf16.xpose.msra.mxu0 0
    %291 = vmatprep.subr.bf16.mxu0 0
    %292 = vmatpush1.bf16.xpose.msra.mxu0 0
    %293 = vmatprep.subr.bf16.mxu0 0
    %294 = vmatpush1.bf16.xpose.msra.mxu0 0
    %295 = vmatprep.subr.bf16.mxu0 0
    %296 = vmatpush1.bf16.xpose.msra.mxu0 0
    %297 = vmatprep.subr.bf16.mxu0 0
    %298 = vmatpush1.bf16.xpose.msra.mxu0 0
    %299 = vmatprep.subr.bf16.mxu0 0
    %300 = vmatpush1.bf16.xpose.msra.mxu0 0
    %301 = vmatprep.subr.bf16.mxu0 0
    %302 = vmatpush1.bf16.xpose.msra.mxu0 0
    %303 = vmatprep.subr.bf16.mxu0 0
    %304 = vmatpush1.bf16.xpose.msra.mxu0 0
    %305 = vmatprep.subr.bf16.mxu0 0
    %306 = vmatpush1.bf16.xpose.msra.mxu0 0
    %307 = vmatprep.subr.bf16.mxu0 0
    %308 = vmatpush1.bf16.xpose.msra.mxu0 0
    %309 = vmatprep.subr.bf16.mxu0 0
    %310 = vmatpush1.bf16.xpose.msra.mxu0 0
    %311 = vmatprep.subr.bf16.mxu0 0
    %312 = vmatpush1.bf16.xpose.msra.mxu0 0
    %313 = vmatprep.mubr.bf16.mxu0 0
    %314 = vmatmul.mubr.bf16.gmra.mrb[0].mxu0 %v276
    %v315 = vpop.f32.mrb[0].mxu0
    %v316 = vadd.f32 0.0, %v315
    %v317 = vpop.f32.mrb[0].mxu0
    %v318 = vpop.f32.mrb[0].mxu0
    %v319 = vpop.f32.mrb[0].mxu0
    %320 = vdwg.mxu0
    %s321 = scalar_lea.vmem %s1, 8
    %v322 = vld [vmem:[%s321] sm:$0xff]
    %vm323 = vcmp.ne.f32.partialorder %v322, 0.0
    %s324 = scalar_lea.vmem [#allocation5], 1
    %v325 = vld [vmem:[%s324] sm:$0x1]
    %vm326 = vcmp.ne.f32.partialorder %v325, 0.0
    %v327 = vsel %vm323, 1, 0
    %328 = vset.pattern.permute.xlu0 0
    %329 = vperm.xlu0 %328, %v327
    %v330 = vpop.permute.xlu0 %329
    %vm331 = vcmp.eq.s32.totalorder %v330, 1
    %v332 = vsel %vm326, 1, 0
    %v333 = vlaneseq
    %v334 = vshrl.u32 %v333, 7
    %v335 = vsub.s32 0, %v334
    %v336 = vrot.slane %v332, %v335
    %vm337 = vcmp.eq.s32.totalorder %v336, 1
    %vm338 = vmand %vm331, %vm337
    %v339 = vsel %vm338, %v316, -1e+09
    %v340 = vsel %vm190, %v339, -inf
    %341 = vmax.xlane.f32.xlu0 %v340
    %v342 = vpop.xlane.xlu0 %341
    %v343 = vsub.f32 %v339, %v342
    %v344 = vmul.f32 %v343, 1.442695
    %v345 = vpow.pop %v344
    %v346 = vsel %vm190, %v345, 0.0
    %347 = vadd.xlane.f32.xlu0 %v346
    %v348 = vpop.xlane.xlu0 %347
    %v349 = vrcp.pop %v348
    %v350 = vmul.f32 %v345, %v349
    %v351 = vpack.c.bf16 %v350, %v350
    %352 = vxpose.xlu0.c.b16.start [1/8] %v351, 128
    %353 = vxpose.xlu0.c.b16.cont [2/8] 0, 128
    %354 = vxpose.xlu0.c.b16.cont [3/8] 0, 128
    %355 = vxpose.xlu0.c.b16.cont [4/8] 0, 128
    %356 = vxpose.xlu0.c.b16.cont [5/8] 0, 128
    %357 = vxpose.xlu0.c.b16.cont [6/8] 0, 128
    %358 = vxpose.xlu0.c.b16.cont [7/8] 0, 128
    %359 = vxpose.xlu0.c.b16.end [8/8] 0, 128
    %v360 = vpop.trf.xlu0
    %v361 = vpop.trf.xlu0
    %v362 = vpop.trf.xlu0
    %v363 = vpop.trf.xlu0
    %v364 = vpop.trf.xlu0
    %v365 = vpop.trf.xlu0
    %v366 = vpop.trf.xlu0
    %v367 = vpop.trf.xlu0
    %368 = vrot.lane.b32.xlu0 %v271, 64
    %v369 = vpop.permute.xlu0 %368
    %v371 = vsel %vm190, %v360, 0
    %v374 = vsel %vm224, %v369, 0
    %376 = vmatprep.subr.bf16.mxu0 0
    %377 = vmatpush1.bf16.msra.mxu0 %v374
    %378 = vmatprep.subr.bf16.mxu0 0
    %379 = vmatpush1.bf16.msra.mxu0 0
    %380 = vmatprep.subr.bf16.mxu0 0
    %381 = vmatpush1.bf16.msra.mxu0 0
    %382 = vmatprep.subr.bf16.mxu0 0
    %383 = vmatpush1.bf16.msra.mxu0 0
    %384 = vmatprep.subr.bf16.mxu0 0
    %385 = vmatpush1.bf16.msra.mxu0 0
    %386 = vmatprep.subr.bf16.mxu0 0
    %387 = vmatpush1.bf16.msra.mxu0 0
    %388 = vmatprep.subr.bf16.mxu0 0
    %389 = vmatpush1.bf16.msra.mxu0 0
    %390 = vmatprep.subr.bf16.mxu0 0
    %391 = vmatpush1.bf16.msra.mxu0 0
    %392 = vmatprep.subr.bf16.mxu0 0
    %393 = vmatpush1.bf16.msra.mxu0 0
    %394 = vmatprep.subr.bf16.mxu0 0
    %395 = vmatpush1.bf16.msra.mxu0 0
    %396 = vmatprep.subr.bf16.mxu0 0
    %397 = vmatpush1.bf16.msra.mxu0 0
    %398 = vmatprep.subr.bf16.mxu0 0
    %399 = vmatpush1.bf16.msra.mxu0 0
    %400 = vmatprep.subr.bf16.mxu0 0
    %401 = vmatpush1.bf16.msra.mxu0 0
    %402 = vmatprep.subr.bf16.mxu0 0
    %403 = vmatpush1.bf16.msra.mxu0 0
    %404 = vmatprep.subr.bf16.mxu0 0
    %405 = vmatpush1.bf16.msra.mxu0 0
    %406 = vmatprep.subr.bf16.mxu0 0
    %407 = vmatpush1.bf16.msra.mxu0 0
    %408 = vmatprep.mubr.bf16.mxu0 0
    %409 = vmatmul.mubr.bf16.gmra.mrb[0].mxu0 %v371
    %v410 = vpop.f32.mrb[0].mxu0
    %v411 = vadd.f32 0.0, %v410
    %v412 = vpop.f32.mrb[0].mxu0
    %v413 = vpop.f32.mrb[0].mxu0
    %v414 = vpop.f32.mrb[0].mxu0
    %415 = vdwg.mxu0
    %s416 = scalar_lea.vmem [#allocation8], 8
    %417 = vst.msk [vmem:[%s416] sm:$0xff] %vm190, %v350
    %v418 = vpack.c.bf16 %v411, %v263
    %v419 = vld [vmem:[%s4] sm:$0xf]
    %v420 = vld [vmem:[%s4 + $0x4] sm:$0xf]
    %v421 = vld [vmem:[%s4 + $0x8] sm:$0xf]
    %v422 = vld [vmem:[%s4 + $0xc] sm:$0xf]
    %v427 = vunpack.c.l.b16 %v419
    %v428 = vunpack.c.l.b16 %v420
    %v429 = vunpack.c.l.b16 %v421
    %v430 = vunpack.c.l.b16 %v422
    %v431 = vpack.c.b16 %v428, %v427
    %v432 = vpack.c.b16 %v430, %v429
    %v436 = vsel %vm76, %v418, 0
    %438 = vmatprep.subr.bf16.mxu0 0
    %439 = vmatpush1.bf16.msra.mxu0 %v431
    %440 = vmatprep.subr.bf16.mxu0 0
    %441 = vmatpush1.bf16.msra.mxu0 %v432
    %442 = vmatprep.subr.bf16.mxu0 0
    %443 = vmatpush1.bf16.msra.mxu0 0
    %444 = vmatprep.subr.bf16.mxu0 0
    %445 = vmatpush1.bf16.msra.mxu0 0
    %446 = vmatprep.subr.bf16.mxu0 0
    %447 = vmatpush1.bf16.msra.mxu0 0
    %448 = vmatprep.subr.bf16.mxu0 0
    %449 = vmatpush1.bf16.msra.mxu0 0
    %450 = vmatprep.subr.bf16.mxu0 0
    %451 = vmatpush1.bf16.msra.mxu0 0
    %452 = vmatprep.subr.bf16.mxu0 0
    %453 = vmatpush1.bf16.msra.mxu0 0
    %454 = vmatprep.subr.bf16.mxu0 0
    %455 = vmatpush1.bf16.msra.mxu0 0
    %456 = vmatprep.subr.bf16.mxu0 0
    %457 = vmatpush1.bf16.msra.mxu0 0
    %458 = vmatprep.subr.bf16.mxu0 0
    %459 = vmatpush1.bf16.msra.mxu0 0
    %460 = vmatprep.subr.bf16.mxu0 0
    %461 = vmatpush1.bf16.msra.mxu0 0
    %462 = vmatprep.subr.bf16.mxu0 0
    %463 = vmatpush1.bf16.msra.mxu0 0
    %464 = vmatprep.subr.bf16.mxu0 0
    %465 = vmatpush1.bf16.msra.mxu0 0
    %466 = vmatprep.subr.bf16.mxu0 0
    %467 = vmatpush1.bf16.msra.mxu0 0
    %468 = vmatprep.subr.bf16.mxu0 0
    %469 = vmatpush1.bf16.msra.mxu0 0
    %470 = vmatprep.mubr.bf16.mxu0 0
    %471 = vmatmul.mubr.bf16.gmra.mrb[0].mxu0 %v436
    %v472 = vpop.f32.mrb[0].mxu0
    %v473 = vadd.f32 0.0, %v472
    %v474 = vpop.f32.mrb[0].mxu0
    %v475 = vpop.f32.mrb[0].mxu0
    %v476 = vadd.f32 0.0, %v475
    %v477 = vpop.f32.mrb[0].mxu0
    %478 = vdwg.mxu0
    %479 = vst.msk [vmem:[#allocation7] sm:$0xff] %vm76, %v473
    %480 = vst.msk [vmem:[#allocation7 + $0x8] sm:$0xff] %vm76, %v476
    // Predicated region
    $region30: #{tpu_custom_call.1} parent=1 // pred_check
      _
    $region31: #{tpu_custom_call.1} parent=1 // pred_check_branch
      %482 = sbr.rel (0) target = $region33
    $region32: #{tpu_custom_call.1} parent=1 // pred_region
      %s484 = ssub.s32 256, 256
      %485 = vsyncadd [#allocation4], %s484
      %s486 = sshll.u32 [#allocation7], 4
      %s487 = int_to_ptr.vmem [resolvable:$true] %s486
      %492 = dma.vmem_to_hbm [thread:$0]  %s487, 256, %s5, [#allocation4], 128, 128, 8
    $region33: #{tpu_custom_call.1} parent=1 // pred_fallthru
      _
    // Predicated region
    $region34: #{tpu_custom_call.1} parent=1 // pred_check
      _
    $region35: #{tpu_custom_call.1} parent=1 // pred_check_branch
      %494 = sbr.rel (0) target = $region37
    $region36: #{tpu_custom_call.1} parent=1 // pred_region
      %s496 = ssub.s32 256, 256
      %497 = vsyncadd [#allocation9], %s496
      %s498 = sshll.u32 [#allocation8], 4
      %s499 = int_to_ptr.vmem [resolvable:$true] %s498
      %504 = dma.vmem_to_hbm [thread:$0]  %s499, 256, %s6, [#allocation9], 128, 128, 8
    $region37: #{tpu_custom_call.1} parent=1 // pred_fallthru
      _
    // Predicated region
    $region38: #{tpu_custom_call.1} parent=1 // pred_check
      _
    $region39: #{tpu_custom_call.1} parent=1 // pred_check_branch
      %506 = sbr.rel (0) target = $region41
    $region40: #{tpu_custom_call.1} parent=1 // pred_region
      %507 = dma.done [#allocation4], 256
    $region41: #{tpu_custom_call.1} parent=1 // pred_fallthru
      _
    // Predicated region
    $region42: #{tpu_custom_call.1} parent=1 // pred_check
      _
    $region43: #{tpu_custom_call.1} parent=1 // pred_check_branch
      %509 = sbr.rel (0) target = $region45
    $region44: #{tpu_custom_call.1} parent=1 // pred_region
      %510 = dma.done [#allocation9], 256
    $region45: #{tpu_custom_call.1} parent=1 // pred_fallthru
      _
    %511 = vsyncpa [#allocation3], 1
    %512 = vsyncpa [#allocation6], 1
    %513 = vsyncpa [#allocation4], 1
    %514 = vsyncpa [#allocation9], 1

</llo_original>
